<compile_context>
chip_gen: v7x
topology: tpu7x:2x2x1
jax: 0.10.0
libtpu: 0.0.40
codegen_flags: <defaults>
</compile_context>

<pallas_src>
import functools

import jax
import jax.numpy as jnp
from jax.experimental import pallas as pl
from jax.experimental.pallas import tpu as pltpu


def _round_up(x, m):
    return ((x + m - 1) // m) * m


# ----------------------------------------------------------------------------
# Fused Pallas kernel: whole CasperNetwork forward for one batch tile.
# ----------------------------------------------------------------------------
def _casper_kernel(x_ref, winb_ref, bin_ref, casc_ref, wout_ref, bout_ref,
                   wot_ref, bo_ref, o_ref, slab_ref, *,
                   n_input, n_neurons, n_output):
    TB, D_pad = slab_ref.shape
    N = n_neurons
    D_out = n_input + N if N > 0 else n_input

    x = x_ref[...].astype(jnp.float32)                      # (TB, n_input)

    # "out" slab columns: [x | out_col_0 .. out_col_{N-1} | zero padding].
    slab_ref[:, :n_input] = x
    if D_out < D_pad:
        # Only the padded tail needs zeroing (stale VMEM * 0 weight = NaN
        # otherwise); live columns are fully rewritten every grid step.
        slab_ref[:, D_out:] = jnp.zeros((TB, D_pad - D_out), jnp.float32)

    if N > 0:
        # One MXU matmul gives every neuron's contribution from the raw input.
        base = jnp.dot(x, winb_ref[...], preferred_element_type=jnp.float32)

        # Cascade: unrolled at trace time (neuron count is static and the
        # recurrence is sequential by construction).  Frozen pre-activation
        # columns are kept live in vregs; all coefficients come from SMEM.
        prevs = []                                           # list of (TB, 1)
        for k in range(N):
            prev = base[:, k:k + 1] + bin_ref[k]
            for j in range(k):
                prev = prev + prevs[j] * casc_ref[k * N + j]
            t = jnp.tanh(prev)                               # EUP
            col = t * wout_ref[k] + bout_ref[k]              # 1x1 linear
            if k == N - 1:
                col = jnp.tanh(col)                          # current L1/L2 pair
            else:
                prevs.append(prev)          # frozen pair: x grows by PRE-activation
            slab_ref[:, n_input + k:n_input + k + 1] = col

    # Head linear (output_layer, or Initial when n_neurons == 0): MXU matmul
    # of the lane-dense slab against the pre-transposed, zero-padded weight.
    y = jnp.dot(slab_ref[...], wot_ref[...], preferred_element_type=jnp.float32)
    y = y + bo_ref[...]
    o_ref[...] = y[:, :n_output].astype(o_ref.dtype)


def casper_forward_pallas(packed, x, *, tb=None):
    """Fused forward: one pallas_call, batch-tiled grid."""
    x = jnp.asarray(x, jnp.float32)
    B = x.shape[0]
    n_input = packed["n_input"]
    n_output = packed["n_output"]
    D_pad = packed["D_pad"]
    NO_pad = packed["NO_pad"]
    NB_pad = packed["NB_pad"]

    # Batch tile: multiple of 8 (f32 sublane).  128 keeps the head-matmul M
    # dimension MXU-friendly while the (TB, 1) cascade columns stay cheap in
    # vregs; raise for throughput on big batches if n_neurons is small.
    if tb is None:
        tb = max(8, min(128, _round_up(B, 8)))
    B_pad = _round_up(B, tb)
    if B_pad != B:
        x = jnp.zeros((B_pad, n_input), jnp.float32).at[:B].set(x)

    kernel = functools.partial(
        _casper_kernel,
        n_input=n_input,
        n_neurons=packed["n_neurons"],
        n_output=n_output,
    )
    smem = pltpu.MemorySpace.SMEM

    y = pl.pallas_call(
        kernel,
        out_shape=jax.ShapeDtypeStruct((B_pad, n_output), jnp.float32),
        grid=(B_pad // tb,),
        in_specs=[
            pl.BlockSpec((tb, n_input), lambda i: (i, 0)),        # x (batch tiled)
            pl.BlockSpec((n_input, NB_pad), lambda i: (0, 0)),    # win_base (VMEM)
            pl.BlockSpec(memory_space=smem),                      # b_in   (SMEM)
            pl.BlockSpec(memory_space=smem),                      # casc   (SMEM)
            pl.BlockSpec(memory_space=smem),                      # w_out  (SMEM)
            pl.BlockSpec(memory_space=smem),                      # b_out  (SMEM)
            pl.BlockSpec((D_pad, NO_pad), lambda i: (0, 0)),      # wot (VMEM)
            pl.BlockSpec((1, NO_pad), lambda i: (0, 0)),          # bo  (VMEM)
        ],
        out_specs=pl.BlockSpec((tb, n_output), lambda i: (i, 0)),
        scratch_shapes=[pltpu.VMEM((tb, D_pad), jnp.float32)],    # out slab
        compiler_params=pltpu.CompilerParams(
            dimension_semantics=("parallel",)),
    )(x, packed["win_base"], packed["b_in"], packed["casc"],
      packed["w_out"], packed["b_out"], packed["wot"], packed["bo"])
    return y[:B]


# ----------------------------------------------------------------------------
# Parameter construction (mirrors CasperNetwork.__init__ + add_layer calls)
# and one-time packing into kernel operands.
# ----------------------------------------------------------------------------
def _uniform(key, shape, lo, hi):
    return jax.random.uniform(key, shape, jnp.float32, lo, hi)


def make_casper_params(key, n_input, n_output, n_neurons):
    keys = iter(jax.random.split(key, 64))
    p = {
        "n_input": n_input,
        "n_output": n_output,
        "initial": (_uniform(next(keys), (n_output, n_input), -0.7, 0.7),
                    _uniform(next(keys), (n_output,), -0.7, 0.7)),
        "output": (_uniform(next(keys), (n_output, n_input), -0.7, 0.7),
                   _uniform(next(keys), (n_output,), -0.7, 0.7)),
        "old_in": [],
        "old_out": [],
        "L1": None,
        "L2": None,
    }
    for k in range(1, n_neurons + 1):
        prev_w, _ = p["output"]
        new_col = _uniform(next(keys), (n_output, 1), -0.1, 0.1)
        new_out_w = jnp.concatenate([prev_w, new_col], axis=1)
        new_out_b = _uniform(next(keys), (n_output,), -0.1, 0.1)
        p["output"] = (new_out_w, new_out_b)
        total_inputs = n_input + k - 1
        new_L1 = (_uniform(next(keys), (1, total_inputs), -0.1, 0.1),
                  _uniform(next(keys), (1,), -0.1, 0.1))
        new_L2 = (_uniform(next(keys), (1, 1), -0.1, 0.1),
                  _uniform(next(keys), (1,), -0.1, 0.1))
        if p["L1"] is None and p["L2"] is None:
            p["L1"], p["L2"] = new_L1, new_L2
        else:
            p["old_in"].append(p["L1"])
            p["old_out"].append(p["L2"])
            p["L1"], p["L2"] = new_L1, new_L2
    return p


def pack_casper_params(p):
    """One-time packing: zero-pad / pre-transpose weights into lane-friendly
    slabs + SMEM scalar tables so the fused kernel needs no per-call glue."""
    n_input, n_output = p["n_input"], p["n_output"]
    hidden = []
    if p["L1"] is not None:
        hidden = list(zip(p["old_in"], p["old_out"])) + [(p["L1"], p["L2"])]
    N = len(hidden)
    rows = max(N, 1)
    D_out = n_input + N if N > 0 else n_input
    D_pad = max(128, _round_up(D_out, 128))
    NO_pad = max(128, _round_up(n_output, 128))
    NB_pad = max(128, _round_up(rows, 128))

    # Pre-transposed base input weights: win_base[:, k] = L1_k.weight[0, :n_input].
    win_base = jnp.zeros((n_input, NB_pad), jnp.float32)
    # Flattened cascade coefficients: casc[k*N + j] = L1_k.weight[0, n_input + j].
    casc = jnp.zeros((max(N * N, 1),), jnp.float32)
    b_in = jnp.zeros((rows,), jnp.float32)
    w_out = jnp.zeros((rows,), jnp.float32)
    b_out = jnp.zeros((rows,), jnp.float32)
    for k, ((wi, bi), (wo, bo_)) in enumerate(hidden):
        win_base = win_base.at[:, k].set(wi[0, :n_input])
        if k > 0:
            casc = casc.at[k * N:k * N + k].set(wi[0, n_input:n_input + k])
        b_in = b_in.at[k].set(bi[0])
        w_out = w_out.at[k].set(wo[0, 0])
        b_out = b_out.at[k].set(bo_[0])

    # Head linear: Initial when no neurons have been added, else output_layer.
    W_head, bias_head = p["initial"] if N == 0 else p["output"]
    wot = jnp.zeros((D_pad, NO_pad), jnp.float32)
    wot = wot.at[:W_head.shape[1], :n_output].set(W_head.T)
    bo = jnp.zeros((1, NO_pad), jnp.float32).at[0, :n_output].set(bias_head)

    return dict(n_input=n_input, n_output=n_output, n_neurons=N,
                D_pad=D_pad, NO_pad=NO_pad, NB_pad=NB_pad,
                win_base=win_base, b_in=b_in, casc=casc,
                w_out=w_out, b_out=b_out, wot=wot, bo=bo)


# ----------------------------------------------------------------------------
# Pure-JAX reference (exact transcription of CasperNetwork.forward).
# ----------------------------------------------------------------------------
def casper_forward_ref(p, x):
    def lin(x, w, b):
        return x @ w.T + b
    out = x
    if len(p["old_in"]) == 0:
        if p["L1"] is None:
            return lin(x, *p["initial"])
        temp = jnp.tanh(lin(x, *p["L1"]))
        temp = jnp.tanh(lin(temp, *p["L2"]))
        out = jnp.concatenate([out, temp], axis=1)
    else:
        for (wi, bi), (wo, bo) in zip(p["old_in"], p["old_out"]):
            previous = lin(x, wi, bi)
            out = jnp.concatenate([out, lin(jnp.tanh(previous), wo, bo)], axis=1)
            x = jnp.concatenate([x, previous], axis=1)
        nni = jnp.tanh(lin(x, *p["L1"]))
        nno = jnp.tanh(lin(nni, *p["L2"]))
        out = jnp.concatenate([out, nno], axis=1)
    return lin(out, *p["output"])


if __name__ == "__main__":
    key = jax.random.PRNGKey(0)
    n_input, n_output, batch = 8, 4, 2
    kx, k0, k1, k3 = jax.random.split(key, 4)
    x = jax.random.normal(kx, (batch, n_input), jnp.float32)

    # Exercise every forward path: fresh __init__ (Initial only), one added
    # neuron (L1/L2 only), and three added neurons (2 frozen pairs + L1/L2).
    for kparam, n_neurons in ((k0, 0), (k1, 1), (k3, 3)):
        params = make_casper_params(kparam, n_input, n_output, n_neurons)
        packed = pack_casper_params(params)
        y = jax.block_until_ready(casper_forward_pallas(packed, x))
        y_ref = casper_forward_ref(params, x)
        assert y.shape == (batch, n_output)
        assert jnp.allclose(y, y_ref, atol=5e-5, rtol=1e-4), (
            n_neurons, float(jnp.max(jnp.abs(y - y_ref))))

    print("KERNEL_OK")
</pallas_src>

<mosaic_0001>
module attributes {stable_mosaic.version = 11 : i64} {
  func.func @_casper_kernel(%arg0: i32, %arg1: memref<8x8xf32, #tpu.memory_space<vmem>>, %arg2: memref<8x128xf32, #tpu.memory_space<vmem>>, %arg3: memref<1xf32, #tpu.memory_space<smem>>, %arg4: memref<1xf32, #tpu.memory_space<smem>>, %arg5: memref<1xf32, #tpu.memory_space<smem>>, %arg6: memref<1xf32, #tpu.memory_space<smem>>, %arg7: memref<128x128xf32, #tpu.memory_space<vmem>>, %arg8: memref<1x128xf32, #tpu.memory_space<vmem>>, %arg9: memref<8x4xf32, #tpu.memory_space<vmem>>, %arg10: memref<8x128xf32, #tpu.memory_space<vmem>>) attributes {dimension_semantics = [#tpu.dimension_semantics<parallel>], iteration_bounds = array<i64: 1>, scalar_prefetch = 0 : i64, scratch_operands = 1 : i64, tpu.core_type = #tpu.core_type<tc>, window_params = [{transform_indices = @transform_0, window_bounds = array<i64: 8, 8>}, {pipeline_mode = #tpu.pipeline_mode<synchronous>, transform_indices = @transform_1, window_bounds = array<i64: 8, 128>}, {transform_indices = @transform_2, window_bounds = array<i64: 1>}, {transform_indices = @transform_3, window_bounds = array<i64: 1>}, {transform_indices = @transform_4, window_bounds = array<i64: 1>}, {transform_indices = @transform_5, window_bounds = array<i64: 1>}, {pipeline_mode = #tpu.pipeline_mode<synchronous>, transform_indices = @transform_6, window_bounds = array<i64: 128, 128>}, {pipeline_mode = #tpu.pipeline_mode<synchronous>, transform_indices = @transform_7, window_bounds = array<i64: 1, 128>}, {transform_indices = @transform_8, window_bounds = array<i64: 8, 4>}]} {
    %c0 = arith.constant 0 : index
    %c0_0 = arith.constant 0 : index
    %0 = vector.load %arg1[%c0, %c0_0] : memref<8x8xf32, #tpu.memory_space<vmem>>, vector<8x8xf32>
    %c0_1 = arith.constant 0 : index
    %c0_2 = arith.constant 0 : index
    %1 = vector.load %arg10[%c0_1, %c0_2] : memref<8x128xf32, #tpu.memory_space<vmem>>, vector<8x8xf32>
    tpu.vector_store %arg10[%c0_1, %c0_2], %0 {strides = array<i32>} : memref<8x128xf32, #tpu.memory_space<vmem>>, vector<8x8xf32>,
    %cst = arith.constant 0.000000e+00 : f32
    %2 = vector.broadcast %cst : f32 to vector<8x120xf32>
    %c0_3 = arith.constant 0 : index
    %c8 = arith.constant 8 : index
    %3 = vector.load %arg10[%c0_3, %c8] : memref<8x128xf32, #tpu.memory_space<vmem>>, vector<8x120xf32>
    tpu.vector_store %arg10[%c0_3, %c8], %2 {strides = array<i32>} : memref<8x128xf32, #tpu.memory_space<vmem>>, vector<8x120xf32>,
    %c0_4 = arith.constant 0 : index
    %c0_5 = arith.constant 0 : index
    %4 = vector.load %arg10[%c0_4, %c0_5] : memref<8x128xf32, #tpu.memory_space<vmem>>, vector<8x128xf32>
    %c0_6 = arith.constant 0 : index
    %c0_7 = arith.constant 0 : index
    %5 = vector.load %arg7[%c0_6, %c0_7] : memref<128x128xf32, #tpu.memory_space<vmem>>, vector<128x128xf32>
    %cst_8 = arith.constant dense<0.000000e+00> : vector<8x128xf32>
    %6 = tpu.matmul %4, %5, %cst_8 {dimension_numbers = #tpu.dot_dimension_numbers<[1], [0], [0], [1], [0, 0, 1, 1], [], []>} : vector<8x128xf32>, vector<128x128xf32>, vector<8x128xf32> -> vector<8x128xf32>
    %c0_9 = arith.constant 0 : index
    %c0_10 = arith.constant 0 : index
    %7 = vector.load %arg8[%c0_9, %c0_10] : memref<1x128xf32, #tpu.memory_space<vmem>>, vector<1x128xf32>
    %8 = vector.broadcast %7 : vector<1x128xf32> to vector<8x128xf32>
    %9 = arith.addf %6, %8 : vector<8x128xf32>
    %10 = vector.extract_strided_slice %9 {offsets = [0, 0], sizes = [8, 4], strides = [1, 1]} : vector<8x128xf32> to vector<8x4xf32>
    %c0_11 = arith.constant 0 : index
    %c0_12 = arith.constant 0 : index
    %11 = vector.load %arg9[%c0_11, %c0_12] : memref<8x4xf32, #tpu.memory_space<vmem>>, vector<8x4xf32>
    tpu.vector_store %arg9[%c0_11, %c0_12], %10 {strides = array<i32>} : memref<8x4xf32, #tpu.memory_space<vmem>>, vector<8x4xf32>,
    return
  }
  func.func @transform_0(%arg0: i32) -> (i32, i32) {
    %c0_i32 = arith.constant 0 : i32
    %c0_i32_0 = arith.constant 0 : i32
    return %arg0, %c0_i32 : i32, i32
  }
  func.func @transform_1(%arg0: i32) -> (i32, i32) {
    %c0_i32 = arith.constant 0 : i32
    %c0_i32_0 = arith.constant 0 : i32
    %c0_i32_1 = arith.constant 0 : i32
    return %c0_i32, %c0_i32_0 : i32, i32
  }
  func.func @transform_2(%arg0: i32) -> i32 {
    %c0_i32 = arith.constant 0 : i32
    %c0_i32_0 = arith.constant 0 : i32
    return %c0_i32 : i32
  }
  func.func @transform_3(%arg0: i32) -> i32 {
    %c0_i32 = arith.constant 0 : i32
    %c0_i32_0 = arith.constant 0 : i32
    return %c0_i32 : i32
  }
  func.func @transform_4(%arg0: i32) -> i32 {
    %c0_i32 = arith.constant 0 : i32
    %c0_i32_0 = arith.constant 0 : i32
    return %c0_i32 : i32
  }
  func.func @transform_5(%arg0: i32) -> i32 {
    %c0_i32 = arith.constant 0 : i32
    %c0_i32_0 = arith.constant 0 : i32
    return %c0_i32 : i32
  }
  func.func @transform_6(%arg0: i32) -> (i32, i32) {
    %c0_i32 = arith.constant 0 : i32
    %c0_i32_0 = arith.constant 0 : i32
    %c0_i32_1 = arith.constant 0 : i32
    return %c0_i32, %c0_i32_0 : i32, i32
  }
  func.func @transform_7(%arg0: i32) -> (i32, i32) {
    %c0_i32 = arith.constant 0 : i32
    %c0_i32_0 = arith.constant 0 : i32
    %c0_i32_1 = arith.constant 0 : i32
    return %c0_i32, %c0_i32_0 : i32, i32
  }
  func.func @transform_8(%arg0: i32) -> (i32, i32) {
    %c0_i32 = arith.constant 0 : i32
    %c0_i32_0 = arith.constant 0 : i32
    return %arg0, %c0_i32 : i32, i32
  }
}

</mosaic_0001>

<llo_original>
// kernel: tpu_custom_call.1
$region0: #{tpu_custom_call.1}
  #allocation0 [shape = 'u32[]', space=smem, size = 0x4, offset = 0x4, fixed_abs, tag = 'smem constant byte address 0x4 - core index']
  #allocation1 [shape = 'u32[144,128]{1,0:T(1,128)}', space=vmem, size = 0x12000, scoped, tag = 'internal scratch']
  #allocation2 [shape = 'f32[8,128]{1,0:T(8,128)}', space=vmem, size = 0x1000, scoped, tag = 'scratch operand']
  #allocation3 [shape = 'f32[1]{0:T(128)S(6)}', space=smem, size = 0x200, scoped, tag = 'scoped memory for tpu_custom_call.1']
  #allocation4 [shape = 'f32[1]{0:T(128)S(6)}', space=smem, size = 0x200, scoped, tag = 'scoped memory for tpu_custom_call.1']
  #allocation5 [shape = 'f32[1]{0:T(128)S(6)}', space=smem, size = 0x200, scoped, tag = 'scoped memory for tpu_custom_call.1']
  #allocation6 [shape = 'f32[1]{0:T(128)S(6)}', space=smem, size = 0x200, scoped, tag = 'scoped memory for tpu_custom_call.1']
  %s0 = inlined_call_operand.vmem [shape: f32[8,8], index: 0, kind: input, shape index: {}]
  %s1 = inlined_call_operand.vmem [shape: f32[8,128], index: 1, kind: input, shape index: {}]
  %s2 = inlined_call_operand.<no memory space> [shape: f32[1], index: 2, kind: input, shape index: {}]
  %s3 = inlined_call_operand.<no memory space> [shape: f32[1], index: 3, kind: input, shape index: {}]
  %s4 = inlined_call_operand.<no memory space> [shape: f32[1], index: 4, kind: input, shape index: {}]
  %s5 = inlined_call_operand.<no memory space> [shape: f32[1], index: 5, kind: input, shape index: {}]
  %s6 = inlined_call_operand.hbm [shape: f32[128,128], index: 6, kind: input, shape index: {}]
  %s7 = inlined_call_operand.vmem [shape: f32[1,128], index: 7, kind: input, shape index: {}]
  %s8 = inlined_call_operand.vmem [shape: f32[8,4], index: 8, kind: output, shape index: {}]
  %s9 = sld [smem:[#allocation0]]
  $region46: #{tpu_custom_call.1} parent=0
    _
  %s11 = ssub.s32 1, %s9
  %s12 = scalar_select 0, %s11, %s9
  %13 = sst [smem:[#allocation3]] %s2
  %14 = sst [smem:[#allocation4]] %s3
  %15 = sst [smem:[#allocation5]] %s4
  %16 = sst [smem:[#allocation6]] %s5
  $region1: #{tpu_custom_call.1} parent=0
    #allocation7 [shape = 'u8[65536]{0}', space=vmem, size = 0x10000, scoped, tag = 'input window, operand 6, single buffered']
    #allocation8 [shape = 's32[1]{0}', space=sflag, size = 0x4, scoped, tag = 'scoped memory for tpu_custom_call.1']
    %17 = vsyncpa [#allocation8], 0
    // Predicated region
    $region2: #{tpu_custom_call.1} parent=1 // pred_check
      _
    $region3: #{tpu_custom_call.1} parent=1 // pred_check_branch
      %19 = sbr.rel (0) target = $region5
    $region4: #{tpu_custom_call.1} parent=1 // pred_region
      _
    $region5: #{tpu_custom_call.1} parent=1 // pred_fallthru
      _
    // Predicated region
    $region6: #{tpu_custom_call.1} parent=1 // pred_check
      _
    $region7: #{tpu_custom_call.1} parent=1 // pred_check_branch
      %21 = sbr.rel (0) target = $region9
    $region8: #{tpu_custom_call.1} parent=1 // pred_region
      _
    $region9: #{tpu_custom_call.1} parent=1 // pred_fallthru
      _
    // Predicated region
    $region10: #{tpu_custom_call.1} parent=1 // pred_check
      _
    $region11: #{tpu_custom_call.1} parent=1 // pred_check_branch
      %23 = sbr.rel (0) target = $region13
    $region12: #{tpu_custom_call.1} parent=1 // pred_region
      _
    $region13: #{tpu_custom_call.1} parent=1 // pred_fallthru
      _
    // Predicated region
    $region14: #{tpu_custom_call.1} parent=1 // pred_check
      _
    $region15: #{tpu_custom_call.1} parent=1 // pred_check_branch
      %25 = sbr.rel (0) target = $region17
    $region16: #{tpu_custom_call.1} parent=1 // pred_region
      _
    $region17: #{tpu_custom_call.1} parent=1 // pred_fallthru
      _
    // Predicated region
    $region18: #{tpu_custom_call.1} parent=1 // pred_check
      _
    $region19: #{tpu_custom_call.1} parent=1 // pred_check_branch
      %27 = sbr.rel (0) target = $region21
    $region20: #{tpu_custom_call.1} parent=1 // pred_region
      _
    $region21: #{tpu_custom_call.1} parent=1 // pred_fallthru
      _
    // Predicated region
    $region22: #{tpu_custom_call.1} parent=1 // pred_check
      _
    $region23: #{tpu_custom_call.1} parent=1 // pred_check_branch
      %29 = sbr.rel (0) target = $region25
    $region24: #{tpu_custom_call.1} parent=1 // pred_region
      _
    $region25: #{tpu_custom_call.1} parent=1 // pred_fallthru
      _
    // Predicated region
    $region26: #{tpu_custom_call.1} parent=1 // pred_check
      _
    $region27: #{tpu_custom_call.1} parent=1 // pred_check_branch
      %31 = sbr.rel (0) target = $region29
    $region28: #{tpu_custom_call.1} parent=1 // pred_region
      %s33 = ssub.s32 2048, 2048
      %34 = vsyncadd [#allocation8], %s33
      %s35 = sshll.u32 [#allocation7], 4
      %s36 = int_to_ptr.vmem [resolvable:$true] %s35
      %41 = dma.hbm_to_vmem [thread:$0]  %s6, 2048, %s36, [#allocation8], 128, 128, 8
    $region29: #{tpu_custom_call.1} parent=1 // pred_fallthru
      _
    // Predicated region
    $region30: #{tpu_custom_call.1} parent=1 // pred_check
      _
    $region31: #{tpu_custom_call.1} parent=1 // pred_check_branch
      %43 = sbr.rel (0) target = $region33
    $region32: #{tpu_custom_call.1} parent=1 // pred_region
      _
    $region33: #{tpu_custom_call.1} parent=1 // pred_fallthru
      _
    // Predicated region
    $region34: #{tpu_custom_call.1} parent=1 // pred_check
      _
    $region35: #{tpu_custom_call.1} parent=1 // pred_check_branch
      %45 = sbr.rel (0) target = $region37
    $region36: #{tpu_custom_call.1} parent=1 // pred_region
      %46 = dma.done [#allocation8], 2048
    $region37: #{tpu_custom_call.1} parent=1 // pred_fallthru
      _
    %v47 = vld [vmem:[%s0] sm:$0xff]
    %vm48 = vcmask 64512
    %49 = vst.msk [vmem:[#allocation2] sm:$0xff] %vm48, %v47
    %vm50 = vcmask 1047616
    %51 = vst.msk [vmem:[#allocation2] sm:$0xff] %vm50, 0.0
    %v52 = vld [vmem:[#allocation2] sm:$0xff]
    %v53 = vld [vmem:[#allocation7] sm:$0xff]
    %v54 = vld [vmem:[#allocation7 + $0x8] sm:$0xff]
    %v55 = vld [vmem:[#allocation7 + $0x10] sm:$0xff]
    %v56 = vld [vmem:[#allocation7 + $0x18] sm:$0xff]
    %v57 = vld [vmem:[#allocation7 + $0x20] sm:$0xff]
    %v58 = vld [vmem:[#allocation7 + $0x28] sm:$0xff]
    %v59 = vld [vmem:[#allocation7 + $0x30] sm:$0xff]
    %v60 = vld [vmem:[#allocation7 + $0x38] sm:$0xff]
    %v61 = vld [vmem:[#allocation7 + $0x40] sm:$0xff]
    %v62 = vld [vmem:[#allocation7 + $0x48] sm:$0xff]
    %v63 = vld [vmem:[#allocation7 + $0x50] sm:$0xff]
    %v64 = vld [vmem:[#allocation7 + $0x58] sm:$0xff]
    %v65 = vld [vmem:[#allocation7 + $0x60] sm:$0xff]
    %v66 = vld [vmem:[#allocation7 + $0x68] sm:$0xff]
    %v67 = vld [vmem:[#allocation7 + $0x70] sm:$0xff]
    %v68 = vld [vmem:[#allocation7 + $0x78] sm:$0xff]
    %v69 = vld [vmem:[%s7] sm:$0x1]
    %v71 = vlaneseq
    %v72 = vshrl.u32 %v71, 7
    %v73 = vsub.s32 0, %v72
    %v74 = vrot.slane %v69, %v73
    %76 = vmatprep.subr.mxu0 0.0
    %77 = vmatpush1.msra.mxu0 %v53
    %78 = vmatprep.subr.mxu0 0.0
    %79 = vmatpush1.msra.mxu0 %v54
    %80 = vmatprep.subr.mxu0 0.0
    %81 = vmatpush1.msra.mxu0 %v55
    %82 = vmatprep.subr.mxu0 0.0
    %83 = vmatpush1.msra.mxu0 %v56
    %84 = vmatprep.subr.mxu0 0.0
    %85 = vmatpush1.msra.mxu0 %v57
    %86 = vmatprep.subr.mxu0 0.0
    %87 = vmatpush1.msra.mxu0 %v58
    %88 = vmatprep.subr.mxu0 0.0
    %89 = vmatpush1.msra.mxu0 %v59
    %90 = vmatprep.subr.mxu0 0.0
    %91 = vmatpush1.msra.mxu0 %v60
    %92 = vmatprep.subr.mxu0 0.0
    %93 = vmatpush1.msra.mxu0 %v61
    %94 = vmatprep.subr.mxu0 0.0
    %95 = vmatpush1.msra.mxu0 %v62
    %96 = vmatprep.subr.mxu0 0.0
    %97 = vmatpush1.msra.mxu0 %v63
    %98 = vmatprep.subr.mxu0 0.0
    %99 = vmatpush1.msra.mxu0 %v64
    %100 = vmatprep.subr.mxu0 0.0
    %101 = vmatpush1.msra.mxu0 %v65
    %102 = vmatprep.subr.mxu0 0.0
    %103 = vmatpush1.msra.mxu0 %v66
    %104 = vmatprep.subr.mxu0 0.0
    %105 = vmatpush1.msra.mxu0 %v67
    %106 = vmatprep.subr.mxu0 0.0
    %107 = vmatpush1.msra.mxu0 %v68
    %108 = vmatprep.subr.mxu0 0.0
    %109 = vmatpush1.msra.mxu0 0.0
    %110 = vmatprep.subr.mxu0 0.0
    %111 = vmatpush1.msra.mxu0 0.0
    %112 = vmatprep.subr.mxu0 0.0
    %113 = vmatpush1.msra.mxu0 0.0
    %114 = vmatprep.subr.mxu0 0.0
    %115 = vmatpush1.msra.mxu0 0.0
    %116 = vmatprep.subr.mxu0 0.0
    %117 = vmatpush1.msra.mxu0 0.0
    %118 = vmatprep.subr.mxu0 0.0
    %119 = vmatpush1.msra.mxu0 0.0
    %120 = vmatprep.subr.mxu0 0.0
    %121 = vmatpush1.msra.mxu0 0.0
    %122 = vmatprep.subr.mxu0 0.0
    %123 = vmatpush1.msra.mxu0 0.0
    %124 = vmatprep.subr.mxu0 0.0
    %125 = vmatpush1.msra.mxu0 0.0
    %126 = vmatprep.subr.mxu0 0.0
    %127 = vmatpush1.msra.mxu0 0.0
    %128 = vmatprep.subr.mxu0 0.0
    %129 = vmatpush1.msra.mxu0 0.0
    %130 = vmatprep.subr.mxu0 0.0
    %131 = vmatpush1.msra.mxu0 0.0
    %132 = vmatprep.subr.mxu0 0.0
    %133 = vmatpush1.msra.mxu0 0.0
    %134 = vmatprep.subr.mxu0 0.0
    %135 = vmatpush1.msra.mxu0 0.0
    %136 = vmatprep.subr.mxu0 0.0
    %137 = vmatpush1.msra.mxu0 0.0
    %138 = vmatprep.subr.mxu0 0.0
    %139 = vmatpush1.msra.mxu0 0.0
    %140 = vmatprep.mubr.f32.mxu0 0.0
    %141 = vmatmul.mubr.f32.gmra.mrb[0].mxu0 %v52
    %v142 = vpop.f32.mrb[0].mxu0
    %v143 = vadd.f32 %v74, %v142
    %v144 = vpop.f32.mrb[0].mxu0
    %145 = vdwg.mxu0
    %vm146 = vcmask 31744
    %147 = vst.msk [vmem:[%s8] sm:$0xff] %vm146, %v143
    // Predicated region
    $region38: #{tpu_custom_call.1} parent=1 // pred_check
      _
    $region39: #{tpu_custom_call.1} parent=1 // pred_check_branch
      %149 = sbr.rel (0) target = $region41
    $region40: #{tpu_custom_call.1} parent=1 // pred_region
      _
    $region41: #{tpu_custom_call.1} parent=1 // pred_fallthru
      _
    // Predicated region
    $region42: #{tpu_custom_call.1} parent=1 // pred_check
      _
    $region43: #{tpu_custom_call.1} parent=1 // pred_check_branch
      %151 = sbr.rel (0) target = $region45
    $region44: #{tpu_custom_call.1} parent=1 // pred_region
      _
    $region45: #{tpu_custom_call.1} parent=1 // pred_fallthru
      _
    %152 = vsyncpa [#allocation8], 1

</llo_original>
